<compile_context>
chip_gen: v6e
topology: v6e:2x2x1
jax: 0.10.0
libtpu: 0.0.40
codegen_flags: <defaults>
</compile_context>

<pallas_src>
import functools

import jax
import jax.numpy as jnp
from jax import lax
from jax.experimental import pallas as pl
from jax.experimental.pallas import tpu as pltpu


def self_attention_kernel(x_ref, wqkv_ref, bqkv_ref, wo_ref, bo_ref, out_ref,
                          q_scr, k_scr, v_scr, ctx_scr, *, n_heads, q_tile):
    """One (batch element, query tile) grid step.

    x_ref    : (S, E)   f32   rows of the current batch element (constant over q-tiles)
    wqkv_ref : (E, 3E)  bf16  fused [Wq | Wk | Wv]
    bqkv_ref : (1, 3E)  f32   fused [bq | bk | bv]
    wo_ref   : (E, E)   bf16  output projection weight
    bo_ref   : (1, E)   f32   output projection bias
    out_ref  : (q_tile, E)    output rows for this query tile
    q_scr    : (S, E)   f32   Q for the whole batch element (dynamic row reads)
    k_scr    : (S, E)   bf16  K, resident across query tiles
    v_scr    : (S, E)   bf16  V, resident across query tiles
    ctx_scr  : (q_tile, E) bf16  per-head context written in place (no lane concat)
    """
    S, E = x_ref.shape
    d_head = E // n_heads
    scale = 1.0 / (float(d_head) ** 0.5)
    qi = pl.program_id(1)

    # Fused QKV projection: one wide (S,E)@(E,3E) bf16 MXU matmul with f32
    # accumulation, computed once per batch element (first query tile) and
    # cached in VMEM scratch for all remaining query tiles.
    @pl.when(qi == 0)
    def _():
        xb = x_ref[...].astype(jnp.bfloat16)
        qkv = jnp.dot(xb, wqkv_ref[...],
                      preferred_element_type=jnp.float32) + bqkv_ref[...]
        q_scr[...] = qkv[:, :E]
        k_scr[...] = qkv[:, E:2 * E].astype(jnp.bfloat16)
        v_scr[...] = qkv[:, 2 * E:].astype(jnp.bfloat16)

    row0 = pl.multiple_of(qi * q_tile, q_tile)
    q_rows = q_scr[pl.ds(row0, q_tile), :]                       # (q_tile, E) f32

    for h in range(n_heads):      # statically unrolled; only one head live at a time
        lo, hi = h * d_head, (h + 1) * d_head
        # 1/sqrt(Dh) folded into q: S*Dh VPU muls instead of S*S.
        qh = (q_rows[:, lo:hi] * scale).astype(jnp.bfloat16)     # (q_tile, Dh)
        kh = k_scr[:, lo:hi]                                     # (S, Dh) bf16
        vh = v_scr[:, lo:hi]                                     # (S, Dh) bf16
        s = lax.dot_general(qh, kh, (((1,), (1,)), ((), ())),
                            preferred_element_type=jnp.float32)  # (q_tile, S) f32
        s = s - jnp.max(s, axis=-1, keepdims=True)               # stable softmax (f32)
        p = jnp.exp(s)
        denom = jnp.sum(p, axis=-1, keepdims=True)
        ctx_h = jnp.dot(p.astype(jnp.bfloat16), vh,
                        preferred_element_type=jnp.float32)      # (q_tile, Dh) f32
        # Deferred normalization: scale the small (q_tile, Dh) result; the
        # reciprocal runs on the EUP slot.
        ctx_h = ctx_h * pl.reciprocal(denom, approx=True)
        ctx_scr[:, lo:hi] = ctx_h.astype(jnp.bfloat16)

    out = jnp.dot(ctx_scr[...], wo_ref[...],
                  preferred_element_type=jnp.float32) + bo_ref[...]
    out_ref[...] = out.astype(out_ref.dtype)


def self_attention_forward(x, wq, bq, wk, bk, wv, bv, wo, bo, *, n_heads):
    """x: (B, S, E) float32. Returns (B, S, E). bf16 matmuls, f32 accumulation."""
    B, S, E = x.shape
    assert E % n_heads == 0, "embed_dim must be divisible by n_attention_heads"

    # Query-row tiling: caps the live (q_tile, S) score tile (VMEM fit on v7x);
    # degenerates to a single tile at small S (demo: q_tile = S = 8).
    q_tile = 128 if S % 128 == 0 else S
    num_q_tiles = S // q_tile

    # Fused QKV weights; bf16 operands for the MXU (f32 accumulation in-kernel).
    w_qkv = jnp.concatenate([wq, wk, wv], axis=1).astype(jnp.bfloat16)   # (E, 3E)
    b_qkv = jnp.concatenate([bq, bk, bv], axis=1).astype(jnp.float32)    # (1, 3E)
    wo_b = wo.astype(jnp.bfloat16)
    bo_f = bo.astype(jnp.float32)

    kernel = functools.partial(self_attention_kernel,
                               n_heads=n_heads, q_tile=q_tile)

    # Advisory cost hint for the XLA scheduler.
    flops = int(B * (8 * S * E * E + 4 * S * S * E))
    transcendentals = int(B * n_heads * S * S)
    bytes_accessed = int(4 * 2 * B * S * E + 2 * 4 * E * E + 4 * 4 * E)

    # VMEM budget: bf16 weights (double-buffered by default), x/out blocks,
    # Q/K/V/ctx scratches; generous 2x + 8 MiB headroom, clamped to [32, 100] MiB.
    weight_bytes = 2 * (3 * E * E + E * E) * 2                  # bf16, x2 buffers
    block_bytes = 2 * (4 * S * E + 4 * q_tile * E)              # x + out, x2 buffers
    scratch_bytes = 4 * S * E + 2 * (2 * S * E) + 2 * q_tile * E
    vmem_limit = int(min(max(2 * (weight_bytes + block_bytes + scratch_bytes)
                             + (8 << 20), 32 << 20), 100 << 20))

    const2d = lambda b, q: (0, 0)                                # weights stay resident

    return pl.pallas_call(
        kernel,
        out_shape=jax.ShapeDtypeStruct((B, S, E), x.dtype),
        grid=(B, num_q_tiles),
        in_specs=[
            pl.BlockSpec((None, S, E), lambda b, q: (b, 0, 0)),  # x (all rows of batch b)
            pl.BlockSpec((E, 3 * E), const2d),                   # fused Wqkv (bf16)
            pl.BlockSpec((1, 3 * E), const2d),                   # fused bqkv
            pl.BlockSpec((E, E), const2d),                       # Wo (bf16)
            pl.BlockSpec((1, E), const2d),                       # bo
        ],
        out_specs=pl.BlockSpec((None, q_tile, E), lambda b, q: (b, q, 0)),
        scratch_shapes=[
            pltpu.VMEM((S, E), jnp.float32),       # Q
            pltpu.VMEM((S, E), jnp.bfloat16),      # K
            pltpu.VMEM((S, E), jnp.bfloat16),      # V
            pltpu.VMEM((q_tile, E), jnp.bfloat16), # ctx (per-head writes)
        ],
        compiler_params=pltpu.CompilerParams(
            # batch splits across v7x's two TensorCores; the q-tile axis must
            # stay sequential because K/V scratch is filled at q == 0 and reused.
            dimension_semantics=("parallel", "arbitrary"),
            vmem_limit_bytes=vmem_limit),
        cost_estimate=pl.CostEstimate(flops=flops,
                                      transcendentals=transcendentals,
                                      bytes_accessed=bytes_accessed),
    )(x, w_qkv, b_qkv, wo_b, bo_f)


def init_params(key, embed_dim, n_heads, dtype=jnp.float32):
    """nn.Linear-style uniform init. Weights stored (in, out) so the kernel does
    x @ W + b, matching y = x @ W_pt.T + b exactly."""
    del n_heads  # all four Linears are embed_dim -> embed_dim here
    ks = jax.random.split(key, 8)
    bound = 1.0 / (embed_dim ** 0.5)

    def lin(kw, kb):
        w = jax.random.uniform(kw, (embed_dim, embed_dim), dtype, -bound, bound)
        b = jax.random.uniform(kb, (1, embed_dim), dtype, -bound, bound)
        return w, b

    wq, bq = lin(ks[0], ks[1])
    wk, bk = lin(ks[2], ks[3])
    wv, bv = lin(ks[4], ks[5])
    wo, bo = lin(ks[6], ks[7])
    return wq, bq, wk, bk, wv, bv, wo, bo


def reference_forward(x, wq, bq, wk, bk, wv, bv, wo, bo, *, n_heads):
    """Pure-JAX f32 reference mirroring the PyTorch forward."""
    B, S, E = x.shape
    d_head = E // n_heads
    q = (x @ wq + bq).reshape(B, S, n_heads, d_head).transpose(0, 2, 1, 3)
    k = (x @ wk + bk).reshape(B, S, n_heads, d_head).transpose(0, 2, 1, 3)
    v = (x @ wv + bv).reshape(B, S, n_heads, d_head).transpose(0, 2, 1, 3)
    att = jnp.einsum('bhqd,bhkd->bhqk', q, k) / (float(d_head) ** 0.5)
    att = jax.nn.softmax(att, axis=-1)
    ctx = jnp.einsum('bhqk,bhkd->bhqd', att, v)
    ctx = ctx.transpose(0, 2, 1, 3).reshape(B, S, E)
    return ctx @ wo + bo


if __name__ == "__main__":
    B, S, E, H = 2, 8, 32, 4   # batch, seq, embed_dim, n_attention_heads

    key = jax.random.PRNGKey(0)
    kx, kp = jax.random.split(key)
    x = jax.random.normal(kx, (B, S, E), jnp.float32)
    params = init_params(kp, E, H)

    out = self_attention_forward(x, *params, n_heads=H)
    out = jax.block_until_ready(out)

    ref = reference_forward(x, *params, n_heads=H)
    assert out.shape == (B, S, E), out.shape
    # bf16 MXU operands with f32 accumulation -> bf16-level tolerance vs the
    # pure-f32 reference (documented, intentional).
    assert jnp.allclose(out, ref, atol=5e-2, rtol=5e-2), "mismatch vs reference"

    print("KERNEL_OK")
</pallas_src>

<mosaic_0001>
module attributes {stable_mosaic.version = 11 : i64} {
  func.func @self_attention_kernel(%arg0: i32, %arg1: i32, %arg2: memref<1x8x32xf32, #tpu.memory_space<vmem>>, %arg3: memref<32x96xbf16, #tpu.memory_space<vmem>>, %arg4: memref<1x96xf32, #tpu.memory_space<vmem>>, %arg5: memref<32x32xbf16, #tpu.memory_space<vmem>>, %arg6: memref<1x32xf32, #tpu.memory_space<vmem>>, %arg7: memref<1x8x32xf32, #tpu.memory_space<vmem>>, %arg8: memref<8x32xf32, #tpu.memory_space<vmem>>, %arg9: memref<8x32xbf16, #tpu.memory_space<vmem>>, %arg10: memref<8x32xbf16, #tpu.memory_space<vmem>>, %arg11: memref<8x32xbf16, #tpu.memory_space<vmem>>) attributes {dimension_semantics = [#tpu.dimension_semantics<parallel>, #tpu.dimension_semantics<arbitrary>], iteration_bounds = array<i64: 2, 1>, scalar_prefetch = 0 : i64, scratch_operands = 4 : i64, tpu.core_type = #tpu.core_type<tc>, window_params = [{transform_indices = @transform_0, window_bounds = array<i64: 1, 8, 32>}, {pipeline_mode = #tpu.pipeline_mode<synchronous>, transform_indices = @transform_1, window_bounds = array<i64: 32, 96>}, {pipeline_mode = #tpu.pipeline_mode<synchronous>, transform_indices = @transform_2, window_bounds = array<i64: 1, 96>}, {pipeline_mode = #tpu.pipeline_mode<synchronous>, transform_indices = @transform_3, window_bounds = array<i64: 32, 32>}, {pipeline_mode = #tpu.pipeline_mode<synchronous>, transform_indices = @transform_4, window_bounds = array<i64: 1, 32>}, {transform_indices = @transform_5, window_bounds = array<i64: 1, 8, 32>}]} {
    %c0_i32 = arith.constant 0 : i32
    %0 = arith.cmpi eq, %arg1, %c0_i32 : i32
    %1 = arith.extui %0 : i1 to i32
    %c0_i32_0 = arith.constant 0 : i32
    %2 = arith.cmpi ne, %1, %c0_i32_0 : i32
    scf.if %2 {
      %c0_51 = arith.constant 0 : index
      %c0_52 = arith.constant 0 : index
      %c0_53 = arith.constant 0 : index
      %100 = vector.load %arg2[%c0_51, %c0_52, %c0_53] : memref<1x8x32xf32, #tpu.memory_space<vmem>>, vector<1x8x32xf32>
      %101 = vector.shape_cast %100 : vector<1x8x32xf32> to vector<8x32xf32>
      %102 = arith.truncf %101 : vector<8x32xf32> to vector<8x32xbf16>
      %c0_54 = arith.constant 0 : index
      %c0_55 = arith.constant 0 : index
      %103 = vector.load %arg3[%c0_54, %c0_55] : memref<32x96xbf16, #tpu.memory_space<vmem>>, vector<32x96xbf16>
      %cst_56 = arith.constant dense<0.000000e+00> : vector<8x96xf32>
      %104 = tpu.matmul %102, %103, %cst_56 {dimension_numbers = #tpu.dot_dimension_numbers<[1], [0], [0], [1], [0, 0, 1, 1], [], []>} : vector<8x32xbf16>, vector<32x96xbf16>, vector<8x96xf32> -> vector<8x96xf32>
      %c0_57 = arith.constant 0 : index
      %c0_58 = arith.constant 0 : index
      %105 = vector.load %arg4[%c0_57, %c0_58] : memref<1x96xf32, #tpu.memory_space<vmem>>, vector<1x96xf32>
      %106 = vector.broadcast %105 : vector<1x96xf32> to vector<8x96xf32>
      %107 = arith.addf %104, %106 : vector<8x96xf32>
      %108 = vector.extract_strided_slice %107 {offsets = [0, 0], sizes = [8, 32], strides = [1, 1]} : vector<8x96xf32> to vector<8x32xf32>
      %c0_59 = arith.constant 0 : index
      %c0_60 = arith.constant 0 : index
      %109 = vector.load %arg8[%c0_59, %c0_60] : memref<8x32xf32, #tpu.memory_space<vmem>>, vector<8x32xf32>
      tpu.vector_store %arg8[%c0_59, %c0_60], %108 {strides = array<i32>} : memref<8x32xf32, #tpu.memory_space<vmem>>, vector<8x32xf32>,
      %110 = vector.extract_strided_slice %107 {offsets = [0, 32], sizes = [8, 32], strides = [1, 1]} : vector<8x96xf32> to vector<8x32xf32>
      %111 = arith.truncf %110 : vector<8x32xf32> to vector<8x32xbf16>
      %c0_61 = arith.constant 0 : index
      %c0_62 = arith.constant 0 : index
      %112 = vector.load %arg9[%c0_61, %c0_62] : memref<8x32xbf16, #tpu.memory_space<vmem>>, vector<8x32xbf16>
      tpu.vector_store %arg9[%c0_61, %c0_62], %111 {strides = array<i32>} : memref<8x32xbf16, #tpu.memory_space<vmem>>, vector<8x32xbf16>,
      %113 = vector.extract_strided_slice %107 {offsets = [0, 64], sizes = [8, 32], strides = [1, 1]} : vector<8x96xf32> to vector<8x32xf32>
      %114 = arith.truncf %113 : vector<8x32xf32> to vector<8x32xbf16>
      %c0_63 = arith.constant 0 : index
      %c0_64 = arith.constant 0 : index
      %115 = vector.load %arg10[%c0_63, %c0_64] : memref<8x32xbf16, #tpu.memory_space<vmem>>, vector<8x32xbf16>
      tpu.vector_store %arg10[%c0_63, %c0_64], %114 {strides = array<i32>} : memref<8x32xbf16, #tpu.memory_space<vmem>>, vector<8x32xbf16>,
    } else {
    }
    %c8_i32 = arith.constant 8 : i32
    %3 = arith.muli %arg1, %c8_i32 : i32
    %4 = tpu.assume_multiple %3, 8 : i32
    %5 = arith.index_cast %4 : i32 to index
    %c0 = arith.constant 0 : index
    %6 = vector.load %arg8[%5, %c0] : memref<8x32xf32, #tpu.memory_space<vmem>>, vector<8x32xf32>
    %7 = vector.extract_strided_slice %6 {offsets = [0, 0], sizes = [8, 8], strides = [1, 1]} : vector<8x32xf32> to vector<8x8xf32>
    %cst = arith.constant 0.353553385 : f32
    %8 = vector.broadcast %cst : f32 to vector<8x8xf32>
    %9 = arith.mulf %7, %8 : vector<8x8xf32>
    %10 = arith.truncf %9 : vector<8x8xf32> to vector<8x8xbf16>
    %c0_1 = arith.constant 0 : index
    %c0_2 = arith.constant 0 : index
    %11 = vector.load %arg9[%c0_1, %c0_2] : memref<8x32xbf16, #tpu.memory_space<vmem>>, vector<8x8xbf16>
    %c0_3 = arith.constant 0 : index
    %c0_4 = arith.constant 0 : index
    %12 = vector.load %arg10[%c0_3, %c0_4] : memref<8x32xbf16, #tpu.memory_space<vmem>>, vector<8x8xbf16>
    %cst_5 = arith.constant dense<0.000000e+00> : vector<8x8xf32>
    %13 = tpu.matmul %10, %11, %cst_5 {dimension_numbers = #tpu.dot_dimension_numbers<[1], [1], [0], [0], [0, 0, 1, 0], [], []>} : vector<8x8xbf16>, vector<8x8xbf16>, vector<8x8xf32> -> vector<8x8xf32>
    %cst_6 = arith.constant dense<0xFF800000> : vector<8xf32>
    %14 = vector.multi_reduction <maximumf>, %13, %cst_6 [1] : vector<8x8xf32> to vector<8xf32>
    %15 = vector.shape_cast %14 : vector<8xf32> to vector<8x1xf32>
    %16 = vector.broadcast %15 : vector<8x1xf32> to vector<8x8xf32>
    %17 = arith.subf %13, %16 : vector<8x8xf32>
    %18 = math.exp %17 : vector<8x8xf32>
    %cst_7 = arith.constant dense<0.000000e+00> : vector<8xf32>
    %19 = vector.multi_reduction <add>, %18, %cst_7 [1] : vector<8x8xf32> to vector<8xf32>
    %20 = vector.shape_cast %19 : vector<8xf32> to vector<8x1xf32>
    %21 = arith.truncf %18 : vector<8x8xf32> to vector<8x8xbf16>
    %cst_8 = arith.constant dense<0.000000e+00> : vector<8x8xf32>
    %22 = tpu.matmul %21, %12, %cst_8 {dimension_numbers = #tpu.dot_dimension_numbers<[1], [0], [0], [1], [0, 0, 1, 1], [], []>} : vector<8x8xbf16>, vector<8x8xbf16>, vector<8x8xf32> -> vector<8x8xf32>
    %23 = tpu.reciprocal %20 {approx = true} : vector<8x1xf32> -> vector<8x1xf32>
    %24 = vector.broadcast %23 : vector<8x1xf32> to vector<8x8xf32>
    %25 = arith.mulf %22, %24 : vector<8x8xf32>
    %26 = arith.truncf %25 : vector<8x8xf32> to vector<8x8xbf16>
    %c0_9 = arith.constant 0 : index
    %c0_10 = arith.constant 0 : index
    %27 = vector.load %arg11[%c0_9, %c0_10] : memref<8x32xbf16, #tpu.memory_space<vmem>>, vector<8x8xbf16>
    tpu.vector_store %arg11[%c0_9, %c0_10], %26 {strides = array<i32>} : memref<8x32xbf16, #tpu.memory_space<vmem>>, vector<8x8xbf16>,
    %28 = vector.extract_strided_slice %6 {offsets = [0, 8], sizes = [8, 8], strides = [1, 1]} : vector<8x32xf32> to vector<8x8xf32>
    %cst_11 = arith.constant 0.353553385 : f32
    %29 = vector.broadcast %cst_11 : f32 to vector<8x8xf32>
    %30 = arith.mulf %28, %29 : vector<8x8xf32>
    %31 = arith.truncf %30 : vector<8x8xf32> to vector<8x8xbf16>
    %c0_12 = arith.constant 0 : index
    %c8 = arith.constant 8 : index
    %32 = vector.load %arg9[%c0_12, %c8] : memref<8x32xbf16, #tpu.memory_space<vmem>>, vector<8x8xbf16>
    %c0_13 = arith.constant 0 : index
    %c8_14 = arith.constant 8 : index
    %33 = vector.load %arg10[%c0_13, %c8_14] : memref<8x32xbf16, #tpu.memory_space<vmem>>, vector<8x8xbf16>
    %cst_15 = arith.constant dense<0.000000e+00> : vector<8x8xf32>
    %34 = tpu.matmul %31, %32, %cst_15 {dimension_numbers = #tpu.dot_dimension_numbers<[1], [1], [0], [0], [0, 0, 1, 0], [], []>} : vector<8x8xbf16>, vector<8x8xbf16>, vector<8x8xf32> -> vector<8x8xf32>
    %cst_16 = arith.constant dense<0xFF800000> : vector<8xf32>
    %35 = vector.multi_reduction <maximumf>, %34, %cst_16 [1] : vector<8x8xf32> to vector<8xf32>
    %36 = vector.shape_cast %35 : vector<8xf32> to vector<8x1xf32>
    %37 = vector.broadcast %36 : vector<8x1xf32> to vector<8x8xf32>
    %38 = arith.subf %34, %37 : vector<8x8xf32>
    %39 = math.exp %38 : vector<8x8xf32>
    %cst_17 = arith.constant dense<0.000000e+00> : vector<8xf32>
    %40 = vector.multi_reduction <add>, %39, %cst_17 [1] : vector<8x8xf32> to vector<8xf32>
    %41 = vector.shape_cast %40 : vector<8xf32> to vector<8x1xf32>
    %42 = arith.truncf %39 : vector<8x8xf32> to vector<8x8xbf16>
    %cst_18 = arith.constant dense<0.000000e+00> : vector<8x8xf32>
    %43 = tpu.matmul %42, %33, %cst_18 {dimension_numbers = #tpu.dot_dimension_numbers<[1], [0], [0], [1], [0, 0, 1, 1], [], []>} : vector<8x8xbf16>, vector<8x8xbf16>, vector<8x8xf32> -> vector<8x8xf32>
    %44 = tpu.reciprocal %41 {approx = true} : vector<8x1xf32> -> vector<8x1xf32>
    %45 = vector.broadcast %44 : vector<8x1xf32> to vector<8x8xf32>
    %46 = arith.mulf %43, %45 : vector<8x8xf32>
    %47 = arith.truncf %46 : vector<8x8xf32> to vector<8x8xbf16>
    %c0_19 = arith.constant 0 : index
    %c8_20 = arith.constant 8 : index
    %48 = vector.load %arg11[%c0_19, %c8_20] : memref<8x32xbf16, #tpu.memory_space<vmem>>, vector<8x8xbf16>
    tpu.vector_store %arg11[%c0_19, %c8_20], %47 {strides = array<i32>} : memref<8x32xbf16, #tpu.memory_space<vmem>>, vector<8x8xbf16>,
    %49 = vector.extract_strided_slice %6 {offsets = [0, 16], sizes = [8, 8], strides = [1, 1]} : vector<8x32xf32> to vector<8x8xf32>
    %cst_21 = arith.constant 0.353553385 : f32
    %50 = vector.broadcast %cst_21 : f32 to vector<8x8xf32>
    %51 = arith.mulf %49, %50 : vector<8x8xf32>
    %52 = arith.truncf %51 : vector<8x8xf32> to vector<8x8xbf16>
    %c0_22 = arith.constant 0 : index
    %c16 = arith.constant 16 : index
    %53 = vector.load %arg9[%c0_22, %c16] : memref<8x32xbf16, #tpu.memory_space<vmem>>, vector<8x8xbf16>
    %c0_23 = arith.constant 0 : index
    %c16_24 = arith.constant 16 : index
    %54 = vector.load %arg10[%c0_23, %c16_24] : memref<8x32xbf16, #tpu.memory_space<vmem>>, vector<8x8xbf16>
    %cst_25 = arith.constant dense<0.000000e+00> : vector<8x8xf32>
    %55 = tpu.matmul %52, %53, %cst_25 {dimension_numbers = #tpu.dot_dimension_numbers<[1], [1], [0], [0], [0, 0, 1, 0], [], []>} : vector<8x8xbf16>, vector<8x8xbf16>, vector<8x8xf32> -> vector<8x8xf32>
    %cst_26 = arith.constant dense<0xFF800000> : vector<8xf32>
    %56 = vector.multi_reduction <maximumf>, %55, %cst_26 [1] : vector<8x8xf32> to vector<8xf32>
    %57 = vector.shape_cast %56 : vector<8xf32> to vector<8x1xf32>
    %58 = vector.broadcast %57 : vector<8x1xf32> to vector<8x8xf32>
    %59 = arith.subf %55, %58 : vector<8x8xf32>
    %60 = math.exp %59 : vector<8x8xf32>
    %cst_27 = arith.constant dense<0.000000e+00> : vector<8xf32>
    %61 = vector.multi_reduction <add>, %60, %cst_27 [1] : vector<8x8xf32> to vector<8xf32>
    %62 = vector.shape_cast %61 : vector<8xf32> to vector<8x1xf32>
    %63 = arith.truncf %60 : vector<8x8xf32> to vector<8x8xbf16>
    %cst_28 = arith.constant dense<0.000000e+00> : vector<8x8xf32>
    %64 = tpu.matmul %63, %54, %cst_28 {dimension_numbers = #tpu.dot_dimension_numbers<[1], [0], [0], [1], [0, 0, 1, 1], [], []>} : vector<8x8xbf16>, vector<8x8xbf16>, vector<8x8xf32> -> vector<8x8xf32>
    %65 = tpu.reciprocal %62 {approx = true} : vector<8x1xf32> -> vector<8x1xf32>
    %66 = vector.broadcast %65 : vector<8x1xf32> to vector<8x8xf32>
    %67 = arith.mulf %64, %66 : vector<8x8xf32>
    %68 = arith.truncf %67 : vector<8x8xf32> to vector<8x8xbf16>
    %c0_29 = arith.constant 0 : index
    %c16_30 = arith.constant 16 : index
    %69 = vector.load %arg11[%c0_29, %c16_30] : memref<8x32xbf16, #tpu.memory_space<vmem>>, vector<8x8xbf16>
    tpu.vector_store %arg11[%c0_29, %c16_30], %68 {strides = array<i32>} : memref<8x32xbf16, #tpu.memory_space<vmem>>, vector<8x8xbf16>,
    %70 = vector.extract_strided_slice %6 {offsets = [0, 24], sizes = [8, 8], strides = [1, 1]} : vector<8x32xf32> to vector<8x8xf32>
    %cst_31 = arith.constant 0.353553385 : f32
    %71 = vector.broadcast %cst_31 : f32 to vector<8x8xf32>
    %72 = arith.mulf %70, %71 : vector<8x8xf32>
    %73 = arith.truncf %72 : vector<8x8xf32> to vector<8x8xbf16>
    %c0_32 = arith.constant 0 : index
    %c24 = arith.constant 24 : index
    %74 = vector.load %arg9[%c0_32, %c24] : memref<8x32xbf16, #tpu.memory_space<vmem>>, vector<8x8xbf16>
    %c0_33 = arith.constant 0 : index
    %c24_34 = arith.constant 24 : index
    %75 = vector.load %arg10[%c0_33, %c24_34] : memref<8x32xbf16, #tpu.memory_space<vmem>>, vector<8x8xbf16>
    %cst_35 = arith.constant dense<0.000000e+00> : vector<8x8xf32>
    %76 = tpu.matmul %73, %74, %cst_35 {dimension_numbers = #tpu.dot_dimension_numbers<[1], [1], [0], [0], [0, 0, 1, 0], [], []>} : vector<8x8xbf16>, vector<8x8xbf16>, vector<8x8xf32> -> vector<8x8xf32>
    %cst_36 = arith.constant dense<0xFF800000> : vector<8xf32>
    %77 = vector.multi_reduction <maximumf>, %76, %cst_36 [1] : vector<8x8xf32> to vector<8xf32>
    %78 = vector.shape_cast %77 : vector<8xf32> to vector<8x1xf32>
    %79 = vector.broadcast %78 : vector<8x1xf32> to vector<8x8xf32>
    %80 = arith.subf %76, %79 : vector<8x8xf32>
    %81 = math.exp %80 : vector<8x8xf32>
    %cst_37 = arith.constant dense<0.000000e+00> : vector<8xf32>
    %82 = vector.multi_reduction <add>, %81, %cst_37 [1] : vector<8x8xf32> to vector<8xf32>
    %83 = vector.shape_cast %82 : vector<8xf32> to vector<8x1xf32>
    %84 = arith.truncf %81 : vector<8x8xf32> to vector<8x8xbf16>
    %cst_38 = arith.constant dense<0.000000e+00> : vector<8x8xf32>
    %85 = tpu.matmul %84, %75, %cst_38 {dimension_numbers = #tpu.dot_dimension_numbers<[1], [0], [0], [1], [0, 0, 1, 1], [], []>} : vector<8x8xbf16>, vector<8x8xbf16>, vector<8x8xf32> -> vector<8x8xf32>
    %86 = tpu.reciprocal %83 {approx = true} : vector<8x1xf32> -> vector<8x1xf32>
    %87 = vector.broadcast %86 : vector<8x1xf32> to vector<8x8xf32>
    %88 = arith.mulf %85, %87 : vector<8x8xf32>
    %89 = arith.truncf %88 : vector<8x8xf32> to vector<8x8xbf16>
    %c0_39 = arith.constant 0 : index
    %c24_40 = arith.constant 24 : index
    %90 = vector.load %arg11[%c0_39, %c24_40] : memref<8x32xbf16, #tpu.memory_space<vmem>>, vector<8x8xbf16>
    tpu.vector_store %arg11[%c0_39, %c24_40], %89 {strides = array<i32>} : memref<8x32xbf16, #tpu.memory_space<vmem>>, vector<8x8xbf16>,
    %c0_41 = arith.constant 0 : index
    %c0_42 = arith.constant 0 : index
    %91 = vector.load %arg11[%c0_41, %c0_42] : memref<8x32xbf16, #tpu.memory_space<vmem>>, vector<8x32xbf16>
    %c0_43 = arith.constant 0 : index
    %c0_44 = arith.constant 0 : index
    %92 = vector.load %arg5[%c0_43, %c0_44] : memref<32x32xbf16, #tpu.memory_space<vmem>>, vector<32x32xbf16>
    %cst_45 = arith.constant dense<0.000000e+00> : vector<8x32xf32>
    %93 = tpu.matmul %91, %92, %cst_45 {dimension_numbers = #tpu.dot_dimension_numbers<[1], [0], [0], [1], [0, 0, 1, 1], [], []>} : vector<8x32xbf16>, vector<32x32xbf16>, vector<8x32xf32> -> vector<8x32xf32>
    %c0_46 = arith.constant 0 : index
    %c0_47 = arith.constant 0 : index
    %94 = vector.load %arg6[%c0_46, %c0_47] : memref<1x32xf32, #tpu.memory_space<vmem>>, vector<1x32xf32>
    %95 = vector.broadcast %94 : vector<1x32xf32> to vector<8x32xf32>
    %96 = arith.addf %93, %95 : vector<8x32xf32>
    %c0_48 = arith.constant 0 : index
    %c0_49 = arith.constant 0 : index
    %c0_50 = arith.constant 0 : index
    %97 = vector.load %arg7[%c0_48, %c0_49, %c0_50] : memref<1x8x32xf32, #tpu.memory_space<vmem>>, vector<1x8x32xf32>
    %98 = vector.shape_cast %97 : vector<1x8x32xf32> to vector<8x32xf32>
    %99 = vector.shape_cast %96 : vector<8x32xf32> to vector<1x8x32xf32>
    tpu.vector_store %arg7[%c0_48, %c0_49, %c0_50], %99 {strides = array<i32>} : memref<1x8x32xf32, #tpu.memory_space<vmem>>, vector<1x8x32xf32>,
    return
  }
  func.func @transform_0(%arg0: i32, %arg1: i32) -> (i32, i32, i32) {
    %c0_i32 = arith.constant 0 : i32
    %c0_i32_0 = arith.constant 0 : i32
    %c0_i32_1 = arith.constant 0 : i32
    return %arg0, %c0_i32, %c0_i32_0 : i32, i32, i32
  }
  func.func @transform_1(%arg0: i32, %arg1: i32) -> (i32, i32) {
    %c0_i32 = arith.constant 0 : i32
    %c0_i32_0 = arith.constant 0 : i32
    %c0_i32_1 = arith.constant 0 : i32
    return %c0_i32, %c0_i32_0 : i32, i32
  }
  func.func @transform_2(%arg0: i32, %arg1: i32) -> (i32, i32) {
    %c0_i32 = arith.constant 0 : i32
    %c0_i32_0 = arith.constant 0 : i32
    %c0_i32_1 = arith.constant 0 : i32
    return %c0_i32, %c0_i32_0 : i32, i32
  }
  func.func @transform_3(%arg0: i32, %arg1: i32) -> (i32, i32) {
    %c0_i32 = arith.constant 0 : i32
    %c0_i32_0 = arith.constant 0 : i32
    %c0_i32_1 = arith.constant 0 : i32
    return %c0_i32, %c0_i32_0 : i32, i32
  }
  func.func @transform_4(%arg0: i32, %arg1: i32) -> (i32, i32) {
    %c0_i32 = arith.constant 0 : i32
    %c0_i32_0 = arith.constant 0 : i32
    %c0_i32_1 = arith.constant 0 : i32
    return %c0_i32, %c0_i32_0 : i32, i32
  }
  func.func @transform_5(%arg0: i32, %arg1: i32) -> (i32, i32, i32) {
    %c0_i32 = arith.constant 0 : i32
    %c0_i32_0 = arith.constant 0 : i32
    return %arg0, %arg1, %c0_i32 : i32, i32, i32
  }
}

</mosaic_0001>

<llo_original>
// kernel: tpu_custom_call.1
$region0: #{tpu_custom_call.1}
  #allocation0 [shape = 'u32[]', space=smem, size = 0x4, offset = 0x4, fixed_abs, tag = 'smem constant byte address 0x4 - core index']
  #allocation1 [shape = 'u32[144,128]{1,0:T(1,128)}', space=vmem, size = 0x12000, scoped, tag = 'internal scratch']
  #allocation2 [shape = 'f32[8,32]{1,0:T(8,128)}', space=vmem, size = 0x1000, scoped, tag = 'scratch operand']
  #allocation3 [shape = 'bf16[8,32]{1,0:T(8,128)(2,1)}', space=vmem, size = 0x800, scoped, tag = 'scratch operand']
  #allocation4 [shape = 'bf16[8,32]{1,0:T(8,128)(2,1)}', space=vmem, size = 0x800, scoped, tag = 'scratch operand']
  #allocation5 [shape = 'bf16[8,32]{1,0:T(8,128)(2,1)}', space=vmem, size = 0x800, scoped, tag = 'scratch operand']
  %s0 = inlined_call_operand.hbm [shape: f32[2,8,32], index: 0, kind: input, shape index: {}]
  %s1 = inlined_call_operand.hbm [shape: bf16[32,96], index: 1, kind: input, shape index: {}]
  %s2 = inlined_call_operand.vmem [shape: f32[1,96], index: 2, kind: input, shape index: {}]
  %s3 = inlined_call_operand.hbm [shape: bf16[32,32], index: 3, kind: input, shape index: {}]
  %s4 = inlined_call_operand.vmem [shape: f32[1,32], index: 4, kind: input, shape index: {}]
  %s5 = inlined_call_operand.hbm [shape: f32[2,8,32], index: 5, kind: output, shape index: {}]
  %s6 = sld [smem:[#allocation0]]
  $region69: #{tpu_custom_call.1} parent=0
    _
  %s8 = ssub.s32 1, %s6
  %s9 = scalar_select 0, %s8, %s6
  $region1: #{tpu_custom_call.1} parent=0
    #allocation6 [shape = 'u8[8192]{0}', space=vmem, size = 0x2000, scoped, tag = 'input window, operand 0']
    #allocation7 [shape = 's32[2]{0}', space=sflag, size = 0x8, scoped, tag = 'scoped memory for tpu_custom_call.1']
    #allocation8 [shape = 's32[2]{0}', space=sflag, size = 0x8, scoped, tag = 'scoped memory for tpu_custom_call.1']
    #allocation9 [shape = 'u8[8192]{0}', space=vmem, size = 0x2000, scoped, tag = 'input window, operand 1, single buffered']
    #allocation10 [shape = 's32[1]{0}', space=sflag, size = 0x4, scoped, tag = 'scoped memory for tpu_custom_call.1']
    #allocation11 [shape = 'u8[8192]{0}', space=vmem, size = 0x2000, scoped, tag = 'input window, operand 3, single buffered']
    #allocation12 [shape = 'u8[8192]{0}', space=vmem, size = 0x2000, scoped, tag = 'output window, operand 0']
    %10 = vsyncpa [#allocation7], 0
    %s11 = scalar_lea.sflag [#allocation7], 1
    %12 = vsyncpa %s11, 0
    %13 = vsyncpa [#allocation10], 0
    %14 = vsyncpa [#allocation8], 0
    %s15 = scalar_lea.sflag [#allocation8], 1
    %16 = vsyncpa %s15, 0
    loop: start=0, step=1, limit=4
    $region2: #{tpu_custom_call.1} parent=1 // loop_pre_header
      _
    $region3: #{tpu_custom_call.1} parent=1 // loop_header
      %s18 = sphi 0, %s22
      %p19 = scmp.ge.s32.totalorder %s18, 4
      %s25 = sphi 0, %s37
      %s26 = sphi 0, %s33
      %s27 = sphi 0, %s25
      %s28 = sphi 0, %s26
      %s29 = sphi 0, %s27
      %s30 = sphi 0, %s28
      %s40 = sphi 0, %s42
      %s43 = sphi 0, %s40
      %s44 = sphi 0, %s43
      %s60 = sphi 0, %s44
      %s64 = sphi 0, %s64
      %s66 = sphi 0, %s64
      %s67 = sphi 0, %s66
      %s81 = sphi 0, %s67
      %s85 = sphi 0, %s85
      %s87 = sphi 0, %s85
      %s88 = sphi 0, %s87
      %s102 = sphi 0, %s88
      %s106 = sphi 0, %s106
      %s108 = sphi 0, %s106
      %s109 = sphi 0, %s108
      %s123 = sphi 0, %s109
      %s127 = sphi 0, %s127
      %s129 = sphi 0, %s127
      %s130 = sphi 0, %s129
      %s144 = sphi 0, %s130
      %s152 = sphi 0, %s154
      %s155 = sphi 0, %s152
      %s156 = sphi 0, %s155
      %s172 = sphi 0, %s156
    $region4: #{tpu_custom_call.1} parent=1 // loop_header_branch
      %21 = sbr.rel (%p19) target = $region8
    $region5: #{tpu_custom_call.1} parent=1 // loop_body
      %s23 = ssub.s32 %s18, 1
      %s24 = ssub.s32 %s18, 2
      %s31 = sadd.s32 1, %s26
      %p32 = scmp.ge.s32.totalorder %s31, 1
      %s33 = scalar_select %p32, 0, %s31
      %s34 = sadd.s32 1, %s25
      %s35 = scalar_select %p32, %s34, %s25
      %p36 = scmp.ge.s32.totalorder %s35, 2
      %s37 = scalar_select %p36, 0, %s35
      %s38 = ssub.s32 %s25, %s37
      %p39 = scmp.eq.s32.totalorder %s38, 0
      %s41 = sadd.s32 %s40, 1
      %s42 = scalar_select %p39, %s40, %s41
      %p45 = pneg %p39
      %p46 = scmp.eq.s32.totalorder %s18, 1
      %p47 = por %p45, %p46
      %p48 = scmp.ne.s32.totalorder %s40, %s43
      %p49 = scmp.eq.s32.totalorder %s18, 0
      %p50 = por %p48, %p49
      %p51 = scmp.ne.s32.totalorder %s40, %s43
      %p52 = scmp.eq.s32.totalorder %s23, 1
      %p53 = por %p51, %p52
      %p54 = scmp.ne.s32.totalorder %s43, %s44
      %p55 = scmp.eq.s32.totalorder %s23, 0
      %p56 = por %p54, %p55
      %p57 = scmp.ne.s32.totalorder %s43, %s44
      %p58 = scmp.eq.s32.totalorder %s24, 1
      %p59 = por %p57, %p58
      %p61 = scmp.ne.s32.totalorder %s44, %s60
      %p62 = scmp.eq.s32.totalorder %s24, 0
      %p63 = por %p61, %p62
      %s65 = sadd.s32 %s64, 1
      %p68 = scmp.eq.s32.totalorder %s18, 1
      %p69 = scmp.ne.s32.totalorder %s64, %s66
      %p70 = scmp.eq.s32.totalorder %s18, 0
      %p71 = por %p69, %p70
      %p72 = scmp.ne.s32.totalorder %s64, %s66
      %p73 = scmp.eq.s32.totalorder %s23, 1
      %p74 = por %p72, %p73
      %p75 = scmp.ne.s32.totalorder %s66, %s67
      %p76 = scmp.eq.s32.totalorder %s23, 0
      %p77 = por %p75, %p76
      %p78 = scmp.ne.s32.totalorder %s66, %s67
      %p79 = scmp.eq.s32.totalorder %s24, 1
      %p80 = por %p78, %p79
      %p82 = scmp.ne.s32.totalorder %s67, %s81
      %p83 = scmp.eq.s32.totalorder %s24, 0
      %p84 = por %p82, %p83
      %s86 = sadd.s32 %s85, 1
      %p89 = scmp.eq.s32.totalorder %s18, 1
      %p90 = scmp.ne.s32.totalorder %s85, %s87
      %p91 = scmp.eq.s32.totalorder %s18, 0
      %p92 = por %p90, %p91
      %p93 = scmp.ne.s32.totalorder %s85, %s87
      %p94 = scmp.eq.s32.totalorder %s23, 1
      %p95 = por %p93, %p94
      %p96 = scmp.ne.s32.totalorder %s87, %s88
      %p97 = scmp.eq.s32.totalorder %s23, 0
      %p98 = por %p96, %p97
      %p99 = scmp.ne.s32.totalorder %s87, %s88
      %p100 = scmp.eq.s32.totalorder %s24, 1
      %p101 = por %p99, %p100
      %p103 = scmp.ne.s32.totalorder %s88, %s102
      %p104 = scmp.eq.s32.totalorder %s24, 0
      %p105 = por %p103, %p104
      %s107 = sadd.s32 %s106, 1
      %p110 = scmp.eq.s32.totalorder %s18, 1
      %p111 = scmp.ne.s32.totalorder %s106, %s108
      %p112 = scmp.eq.s32.totalorder %s18, 0
      %p113 = por %p111, %p112
      %p114 = scmp.ne.s32.totalorder %s106, %s108
      %p115 = scmp.eq.s32.totalorder %s23, 1
      %p116 = por %p114, %p115
      %p117 = scmp.ne.s32.totalorder %s108, %s109
      %p118 = scmp.eq.s32.totalorder %s23, 0
      %p119 = por %p117, %p118
      %p120 = scmp.ne.s32.totalorder %s108, %s109
      %p121 = scmp.eq.s32.totalorder %s24, 1
      %p122 = por %p120, %p121
      %p124 = scmp.ne.s32.totalorder %s109, %s123
      %p125 = scmp.eq.s32.totalorder %s24, 0
      %p126 = por %p124, %p125
      %s128 = sadd.s32 %s127, 1
      %p131 = scmp.eq.s32.totalorder %s18, 1
      %p132 = scmp.ne.s32.totalorder %s127, %s129
      %p133 = scmp.eq.s32.totalorder %s18, 0
      %p134 = por %p132, %p133
      %p135 = scmp.ne.s32.totalorder %s127, %s129
      %p136 = scmp.eq.s32.totalorder %s23, 1
      %p137 = por %p135, %p136
      %p138 = scmp.ne.s32.totalorder %s129, %s130
      %p139 = scmp.eq.s32.totalorder %s23, 0
      %p140 = por %p138, %p139
      %p141 = scmp.ne.s32.totalorder %s129, %s130
      %p142 = scmp.eq.s32.totalorder %s24, 1
      %p143 = por %p141, %p142
      %p145 = scmp.ne.s32.totalorder %s130, %s144
      %p146 = scmp.eq.s32.totalorder %s24, 0
      %p147 = por %p145, %p146
      %s148 = ssub.s32 %s25, %s37
      %s149 = ssub.s32 %s26, %s33
      %s150 = sor.u32 %s148, %s149
      %p151 = scmp.eq.s32.totalorder %s150, 0
      %s153 = sadd.s32 %s152, 1
      %s154 = scalar_select %p151, %s152, %s153
      %p157 = pneg %p151
      %p158 = scmp.eq.s32.totalorder %s18, 1
      %p159 = por %p157, %p158
      %p160 = scmp.ne.s32.totalorder %s152, %s155
      %p161 = scmp.eq.s32.totalorder %s18, 0
      %p162 = por %p160, %p161
      %p163 = scmp.ne.s32.totalorder %s152, %s155
      %p164 = scmp.eq.s32.totalorder %s23, 1
      %p165 = por %p163, %p164
      %p166 = scmp.ne.s32.totalorder %s155, %s156
      %p167 = scmp.eq.s32.totalorder %s23, 0
      %p168 = por %p166, %p167
      %p169 = scmp.ne.s32.totalorder %s155, %s156
      %p170 = scmp.eq.s32.totalorder %s24, 1
      %p171 = por %p169, %p170
      %p173 = scmp.ne.s32.totalorder %s156, %s172
      %p174 = scmp.eq.s32.totalorder %s24, 0
      %p175 = por %p173, %p174
      %p176 = scmp.le.s32.totalorder 1, %s18
      %p177 = scmp.lt.s32.totalorder %s18, 3
      %p178 = pnand %p176, %p177
      %p179 = pneg %p178
      // Predicated region
      $region9: #{tpu_custom_call.1} parent=5 // pred_check
        _
      $region10: #{tpu_custom_call.1} parent=5 // pred_check_branch
        %181 = sbr.rel (%p178) target = $region12
      $region11: #{tpu_custom_call.1} parent=5 // pred_region
        %s182 = ssub.s32 %s18, 1
        // Predicated region
        $region13: #{tpu_custom_call.1} parent=11 // pred_check
          %p183 = pneg %p77
        $region14: #{tpu_custom_call.1} parent=11 // pred_check_branch
          %185 = sbr.rel (%p183) target = $region16
        $region15: #{tpu_custom_call.1} parent=11 // pred_region
          %s187 = ssub.s32 256, 256
          %188 = vsyncadd [#allocation10], %s187
          %s189 = sshll.u32 [#allocation9], 4
          %s190 = int_to_ptr.vmem [resolvable:$true] %s189
          %195 = dma.hbm_to_vmem [thread:$0]  %s1, 256, %s190, [#allocation10], 64, 64, 4
        $region16: #{tpu_custom_call.1} parent=11 // pred_fallthru
          _
        // Predicated region
        $region17: #{tpu_custom_call.1} parent=11 // pred_check
          %p196 = pneg %p98
        $region18: #{tpu_custom_call.1} parent=11 // pred_check_branch
          %198 = sbr.rel (%p196) target = $region20
        $region19: #{tpu_custom_call.1} parent=11 // pred_region
          _
        $region20: #{tpu_custom_call.1} parent=11 // pred_fallthru
          _
        // Predicated region
        $region21: #{tpu_custom_call.1} parent=11 // pred_check
          %p199 = pneg %p119
        $region22: #{tpu_custom_call.1} parent=11 // pred_check_branch
          %201 = sbr.rel (%p199) target = $region24
        $region23: #{tpu_custom_call.1} parent=11 // pred_region
          %s203 = ssub.s32 256, 256
          %204 = vsyncadd [#allocation10], %s203
          %s205 = sshll.u32 [#allocation11], 4
          %s206 = int_to_ptr.vmem [resolvable:$true] %s205
          %211 = dma.hbm_to_vmem [thread:$0]  %s3, 256, %s206, [#allocation10], 64, 64, 4
        $region24: #{tpu_custom_call.1} parent=11 // pred_fallthru
          _
        // Predicated region
        $region25: #{tpu_custom_call.1} parent=11 // pred_check
          %p212 = pneg %p140
        $region26: #{tpu_custom_call.1} parent=11 // pred_check_branch
          %214 = sbr.rel (%p212) target = $region28
        $region27: #{tpu_custom_call.1} parent=11 // pred_region
          _
        $region28: #{tpu_custom_call.1} parent=11 // pred_fallthru
          _
      $region12: #{tpu_custom_call.1} parent=5 // pred_fallthru
        _
      %p215 = scmp.lt.s32.totalorder %s18, 2
      // Predicated region
      $region29: #{tpu_custom_call.1} parent=5 // pred_check
        %p216 = pneg %p215
      $region30: #{tpu_custom_call.1} parent=5 // pred_check_branch
        %218 = sbr.rel (%p216) target = $region32
      $region31: #{tpu_custom_call.1} parent=5 // pred_region
        // Predicated region
        $region33: #{tpu_custom_call.1} parent=31 // pred_check
          %p219 = pneg %p50
        $region34: #{tpu_custom_call.1} parent=31 // pred_check_branch
          %221 = sbr.rel (%p219) target = $region36
        $region35: #{tpu_custom_call.1} parent=31 // pred_region
          %s222 = sand.u32 %s40, 1
          %s223 = scalar_lea.sflag [#allocation7], %s222
          %s224 = sand.u32 %s40, 1
          %s225 = smul.addr %s224, 8
          %s226 = scalar_lea.vmem [#allocation6], %s225
          %s228 = ssub.s32 128, 128
          %229 = vsyncadd %s223, %s228
          %s230 = smul.addr %s25, 128
          %s231 = scalar_lea.hbm %s0, %s230
          %s233 = sshll.u32 %s226, 4
          %s234 = int_to_ptr.vmem [resolvable:$true] %s233
          %236 = dma.hbm_to_vmem [thread:$0]  %s231, 128, %s234, %s223
        $region36: #{tpu_custom_call.1} parent=31 // pred_fallthru
          _
      $region32: #{tpu_custom_call.1} parent=5 // pred_fallthru
        _
      %p237 = scmp.le.s32.totalorder 1, %s18
      %p238 = scmp.lt.s32.totalorder %s18, 3
      %p239 = pnand %p237, %p238
      %p240 = pneg %p239
      // Predicated region
      $region37: #{tpu_custom_call.1} parent=5 // pred_check
        _
      $region38: #{tpu_custom_call.1} parent=5 // pred_check_branch
        %242 = sbr.rel (%p239) target = $region40
      $region39: #{tpu_custom_call.1} parent=5 // pred_region
        %s243 = ssub.s32 %s18, 1
        %s244 = sand.u32 %s43, 1
        %s245 = scalar_lea.sflag [#allocation7], %s244
        %s246 = sand.u32 %s43, 1
        %s247 = smul.addr %s246, 8
        %s248 = scalar_lea.vmem [#allocation6], %s247
        // Predicated region
        $region41: #{tpu_custom_call.1} parent=39 // pred_check
          %p249 = pneg %p56
        $region42: #{tpu_custom_call.1} parent=39 // pred_check_branch
          %251 = sbr.rel (%p249) target = $region44
        $region43: #{tpu_custom_call.1} parent=39 // pred_region
          %252 = dma.done %s245, 128
        $region44: #{tpu_custom_call.1} parent=39 // pred_fallthru
          _
        // Predicated region
        $region45: #{tpu_custom_call.1} parent=39 // pred_check
          %p253 = pneg %p77
        $region46: #{tpu_custom_call.1} parent=39 // pred_check_branch
          %255 = sbr.rel (%p253) target = $region48
        $region47: #{tpu_custom_call.1} parent=39 // pred_region
          %256 = dma.done [#allocation10], 256
        $region48: #{tpu_custom_call.1} parent=39 // pred_fallthru
          _
        // Predicated region
        $region49: #{tpu_custom_call.1} parent=39 // pred_check
          %p257 = pneg %p119
        $region50: #{tpu_custom_call.1} parent=39 // pred_check_branch
          %259 = sbr.rel (%p257) target = $region52
        $region51: #{tpu_custom_call.1} parent=39 // pred_region
          %260 = dma.done [#allocation10], 256
        $region52: #{tpu_custom_call.1} parent=39 // pred_fallthru
          _
        %s261 = sand.u32 %s43, 1
        %s262 = scalar_lea.sflag [#allocation7], %s261
        %s263 = sand.u32 %s43, 1
        %s264 = smul.addr %s263, 8
        %s265 = scalar_lea.vmem [#allocation6], %s264
        %p266 = pneg %p56
        %p267 = pneg %p53
        %p268 = pneg %p77
        %p269 = pneg %p74
        %p270 = pneg %p98
        %p271 = pneg %p95
        %p272 = pneg %p119
        %p273 = pneg %p116
        %p274 = pneg %p140
        %p275 = pneg %p137
        %p276 = pneg %p168
        %p277 = pneg %p165
        %s278 = sand.u32 %s155, 1
        %s279 = scalar_lea.sflag [#allocation8], %s278
        %s280 = sand.u32 %s155, 1
        %s281 = smul.addr %s280, 8
        %s282 = scalar_lea.vmem [#allocation12], %s281
        %p284 = scmp.eq.s32.totalorder %s28, 0
        // Predicated region
        $region53: #{tpu_custom_call.1} parent=39 // pred_check
          %p285 = pneg %p284
        $region54: #{tpu_custom_call.1} parent=39 // pred_check_branch
          %287 = sbr.rel (%p285) target = $region56
        $region55: #{tpu_custom_call.1} parent=39 // pred_region
          %v288 = vld [vmem:[%s248] sm:$0xff]
          %v289 = vpack.c.bf16 %v288, %v288
          %v290 = vld [vmem:[#allocation9] sm:$0xf]
          %v291 = vld [vmem:[#allocation9 + $0x4] sm:$0xf]
          %v292 = vld [vmem:[#allocation9 + $0x8] sm:$0xf]
          %v293 = vld [vmem:[#allocation9 + $0xc] sm:$0xf]
          %v294 = vld [vmem:[%s2] sm:$0x1]
          %v296 = vlaneseq
          %v297 = vshrl.u32 %v296, 7
          %v298 = vsub.s32 0, %v297
          %v299 = vrot.slane %v294, %v298
          %v305 = vunpack.c.l.b16 %v290
          %v306 = vunpack.c.l.b16 %v291
          %v307 = vunpack.c.l.b16 %v292
          %v308 = vunpack.c.l.b16 %v293
          %v309 = vpack.c.b16 %v306, %v305
          %v310 = vpack.c.b16 %v308, %v307
          %vm313 = vcmask 261120
          %v315 = vsel %vm313, %v289, 0
          %317 = vmatprep.subr.bf16.mxu0 0
          %318 = vmatpush1.bf16.msra.mxu0 0
          %319 = vmatprep.subr.bf16.mxu0 0
          %320 = vmatpush1.bf16.msra.mxu0 0
          %321 = vmatprep.subr.bf16.mxu0 0
          %322 = vmatpush1.bf16.msra.mxu0 0
          %323 = vmatprep.subr.bf16.mxu0 0
          %324 = vmatpush1.bf16.msra.mxu0 0
          %325 = vmatprep.subr.bf16.mxu0 0
          %326 = vmatpush1.bf16.msra.mxu0 0
          %327 = vmatprep.subr.bf16.mxu0 0
          %328 = vmatpush1.bf16.msra.mxu0 0
          %329 = vmatprep.subr.bf16.mxu0 0
          %330 = vmatpush1.bf16.msra.mxu0 %v310
          %331 = vmatprep.subr.bf16.mxu0 0
          %332 = vmatpush1.bf16.msra.mxu0 %v309
          %333 = vmatprep.subr.bf16.mxu0 0
          %334 = vmatpush2.bf16.msra.mxu0 0
          %335 = vmatprep.subr.bf16.mxu0 0
          %336 = vmatpush2.bf16.msra.mxu0 0
          %337 = vmatprep.subr.bf16.mxu0 0
          %338 = vmatpush2.bf16.msra.mxu0 0
          %339 = vmatprep.subr.bf16.mxu0 0
          %340 = vmatpush2.bf16.msra.mxu0 0
          %341 = vmatprep.subr.bf16.mxu0 0
          %342 = vmatpush2.bf16.msra.mxu0 0
          %343 = vmatprep.subr.bf16.mxu0 0
          %344 = vmatpush2.bf16.msra.mxu0 0
          %345 = vmatprep.subr.bf16.mxu0 0
          %346 = vmatpush2.bf16.msra.mxu0 0
          %347 = vmatprep.subr.bf16.mxu0 0
          %348 = vmatpush2.bf16.msra.mxu0 0
          %349 = vmatprep.mubr.bf16.mxu0 0
          %350 = vmatmul.mubr.bf16.gmra.mxu0 %v315
          %v351 = vpop.f32.mrf.mxu0
          %v352 = vadd.f32 %v299, %v351
          %v353 = vpop.f32.mrf.mxu0
          %v354 = vpop.f32.mrf.mxu0
          %v355 = vpop.f32.mrf.mxu0
          %356 = vdwg.mxu0
          %357 = vst.msk [vmem:[#allocation2] sm:$0xff] %vm313, %v352
          %v358 = vpack.c.bf16 %v352, %v352
          %v360 = vunpack.c.l.b16 %v358
          %v361 = vpack.c.b16 %v360, %v360
          %362 = vrot.lane.b32.xlu0 %v361, 96
          %v363 = vpop.permute.xlu0 %362
          %vm365 = vcmask 257024
          %366 = vst.msk [vmem:[#allocation3] sm:$0xf] %vm365, %v363
          %367 = vrot.lane.b32.xlu0 %v361, 64
          %v368 = vpop.permute.xlu0 %367
          %370 = vst.msk [vmem:[#allocation4] sm:$0xf] %vm365, %v368
        $region56: #{tpu_custom_call.1} parent=39 // pred_fallthru
          _
        %s371 = smul.u32 %s28, 8
        %s372 = scalar_lea.vmem [#allocation2], %s371
        %v373 = vld [vmem:[%s372] sm:$0xff]
        %v374 = vmul.f32 %v373, 0.35355338
        %v375 = vpack.c.bf16 %v374, %v374
        %v376 = vld [vmem:[#allocation3] sm:$0xf]
        %v377 = vld [vmem:[#allocation4] sm:$0xf]
        %vm378 = vcmask 64512
        %v380 = vsel %vm378, %v375, 0
        %v383 = vsel %vm378, %v376, 0
        %385 = vmatprep.subr.bf16.mxu0 0
        %386 = vmatpush1.bf16.xpose.msra.mxu0 0
        %387 = vmatprep.subr.bf16.mxu0 0
        %388 = vmatpush1.bf16.xpose.msra.mxu0 0
        %389 = vmatprep.subr.bf16.mxu0 0
        %390 = vmatpush1.bf16.xpose.msra.mxu0 0
        %391 = vmatprep.subr.bf16.mxu0 0
        %392 = vmatpush1.bf16.xpose.msra.mxu0 0
        %393 = vmatprep.subr.bf16.mxu0 0
        %394 = vmatpush1.bf16.xpose.msra.mxu0 0
        %395 = vmatprep.subr.bf16.mxu0 0
        %396 = vmatpush1.bf16.xpose.msra.mxu0 0
        %397 = vmatprep.subr.bf16.mxu0 0
        %398 = vmatpush1.bf16.xpose.msra.mxu0 0
        %399 = vmatprep.subr.bf16.mxu0 0
        %400 = vmatpush1.bf16.xpose.msra.mxu0 %v383
        %401 = vmatprep.subr.bf16.mxu0 0
        %402 = vmatpush2.bf16.xpose.msra.mxu0 0
        %403 = vmatprep.subr.bf16.mxu0 0
        %404 = vmatpush2.bf16.xpose.msra.mxu0 0
        %405 = vmatprep.subr.bf16.mxu0 0
        %406 = vmatpush2.bf16.xpose.msra.mxu0 0
        %407 = vmatprep.subr.bf16.mxu0 0
        %408 = vmatpush2.bf16.xpose.msra.mxu0 0
        %409 = vmatprep.subr.bf16.mxu0 0
        %410 = vmatpush2.bf16.xpose.msra.mxu0 0
        %411 = vmatprep.subr.bf16.mxu0 0
        %412 = vmatpush2.bf16.xpose.msra.mxu0 0
        %413 = vmatprep.subr.bf16.mxu0 0
        %414 = vmatpush2.bf16.xpose.msra.mxu0 0
        %415 = vmatprep.subr.bf16.mxu0 0
        %416 = vmatpush2.bf16.xpose.msra.mxu0 0
        %417 = vmatprep.mubr.bf16.mxu0 0
        %418 = vmatmul.mubr.bf16.gmra.mxu0 %v380
        %v419 = vpop.f32.mrf.mxu0
        %v420 = vadd.f32 0.0, %v419
        %v421 = vpop.f32.mrf.mxu0
        %v422 = vpop.f32.mrf.mxu0
        %v423 = vpop.f32.mrf.mxu0
        %424 = vdwg.mxu0
        %v425 = vsel %vm378, %v420, -inf
        %426 = vmax.xlane.f32.xlu0 %v425
        %v427 = vpop.xlane.xlu0 %426
        %v428 = vsub.f32 %v420, %v427
        %v429 = vmul.f32 %v428, 1.442695
        %v430 = vpow.pop %v429
        %v431 = vsel %vm378, %v430, 0.0
        %432 = vadd.xlane.f32.xlu0 %v431
        %v433 = vpop.xlane.xlu0 %432
        %v434 = vpack.c.bf16 %v430, %v430
        %v436 = vsel %vm378, %v434, 0
        %vm438 = vcmask 1043456
        %v440 = vsel %vm438, %v377, 0
        %442 = vmatprep.subr.bf16.mxu0 0
        %443 = vmatpush1.bf16.msra.mxu0 0
        %444 = vmatprep.subr.bf16.mxu0 0
        %445 = vmatpush1.bf16.msra.mxu0 0
        %446 = vmatprep.subr.bf16.mxu0 0
        %447 = vmatpush1.bf16.msra.mxu0 0
        %448 = vmatprep.subr.bf16.mxu0 0
        %449 = vmatpush1.bf16.msra.mxu0 0
        %450 = vmatprep.subr.bf16.mxu0 0
        %451 = vmatpush1.bf16.msra.mxu0 0
        %452 = vmatprep.subr.bf16.mxu0 0
        %453 = vmatpush1.bf16.msra.mxu0 0
        %454 = vmatprep.subr.bf16.mxu0 0
        %455 = vmatpush1.bf16.msra.mxu0 0
        %456 = vmatprep.subr.bf16.mxu0 0
        %457 = vmatpush1.bf16.msra.mxu0 %v440
        %458 = vmatprep.subr.bf16.mxu0 0
        %459 = vmatpush2.bf16.msra.mxu0 0
        %460 = vmatprep.subr.bf16.mxu0 0
        %461 = vmatpush2.bf16.msra.mxu0 0
        %462 = vmatprep.subr.bf16.mxu0 0
        %463 = vmatpush2.bf16.msra.mxu0 0
        %464 = vmatprep.subr.bf16.mxu0 0
        %465 = vmatpush2.bf16.msra.mxu0 0
        %466 = vmatprep.subr.bf16.mxu0 0
        %467 = vmatpush2.bf16.msra.mxu0 0
        %468 = vmatprep.subr.bf16.mxu0 0
        %469 = vmatpush2.bf16.msra.mxu0 0
        %470 = vmatprep.subr.bf16.mxu0 0
        %471 = vmatpush2.bf16.msra.mxu0 0
        %472 = vmatprep.subr.bf16.mxu0 0
        %473 = vmatpush2.bf16.msra.mxu0 0
        %474 = vmatprep.mubr.bf16.mxu0 0
        %475 = vmatmul.mubr.bf16.gmra.mxu0 %v436
        %v476 = vpop.f32.mrf.mxu0
        %v477 = vadd.f32 0.0, %v476
        %v478 = vpop.f32.mrf.mxu0
        %v479 = vpop.f32.mrf.mxu0
        %v480 = vpop.f32.mrf.mxu0
        %481 = vdwg.mxu0
        %v482 = vrcp.pop %v433
        %v483 = vmul.f32 %v477, %v482
        %v484 = vpack.c.bf16 %v483, %v483
        %vm485 = vcmask 60416
        %486 = vst.msk [vmem:[#allocation5] sm:$0xf] %vm485, %v484
        %v487 = vld [vmem:[#allocation3] sm:$0xf]
        %v488 = vld [vmem:[#allocation4] sm:$0xf]
        %490 = vrot.lane.b32.xlu0 %v375, 120
        %v491 = vpop.permute.xlu0 %490
        %v493 = vunpack.c.l.b16 %v487
        %v494 = vpack.c.b16 %v493, %v493
        %495 = vrot.lane.b32.xlu0 %v494, 120
        %v496 = vpop.permute.xlu0 %495
        %v498 = vsel %vm378, %v491, 0
        %v501 = vsel %vm378, %v496, 0
        %503 = vmatprep.subr.bf16.mxu0 0
        %504 = vmatpush1.bf16.xpose.msra.mxu0 0
        %505 = vmatprep.subr.bf16.mxu0 0
        %506 = vmatpush1.bf16.xpose.msra.mxu0 0
        %507 = vmatprep.subr.bf16.mxu0 0
        %508 = vmatpush1.bf16.xpose.msra.mxu0 0
        %509 = vmatprep.subr.bf16.mxu0 0
        %510 = vmatpush1.bf16.xpose.msra.mxu0 0
        %511 = vmatprep.subr.bf16.mxu0 0
        %512 = vmatpush1.bf16.xpose.msra.mxu0 0
        %513 = vmatprep.subr.bf16.mxu0 0
        %514 = vmatpush1.bf16.xpose.msra.mxu0 0
        %515 = vmatprep.subr.bf16.mxu0 0
        %516 = vmatpush1.bf16.xpose.msra.mxu0 0
        %517 = vmatprep.subr.bf16.mxu0 0
        %518 = vmatpush1.bf16.xpose.msra.mxu0 %v501
        %519 = vmatprep.subr.bf16.mxu0 0
        %520 = vmatpush2.bf16.xpose.msra.mxu0 0
        %521 = vmatprep.subr.bf16.mxu0 0
        %522 = vmatpush2.bf16.xpose.msra.mxu0 0
        %523 = vmatprep.subr.bf16.mxu0 0
        %524 = vmatpush2.bf16.xpose.msra.mxu0 0
        %525 = vmatprep.subr.bf16.mxu0 0
        %526 = vmatpush2.bf16.xpose.msra.mxu0 0
        %527 = vmatprep.subr.bf16.mxu0 0
        %528 = vmatpush2.bf16.xpose.msra.mxu0 0
        %529 = vmatprep.subr.bf16.mxu0 0
        %530 = vmatpush2.bf16.xpose.msra.mxu0 0
        %531 = vmatprep.subr.bf16.mxu0 0
        %532 = vmatpush2.bf16.xpose.msra.mxu0 0
        %533 = vmatprep.subr.bf16.mxu0 0
        %534 = vmatpush2.bf16.xpose.msra.mxu0 0
        %535 = vmatprep.mubr.bf16.mxu0 0
        %536 = vmatmul.mubr.bf16.gmra.mxu0 %v498
        %v537 = vpop.f32.mrf.mxu0
        %v538 = vadd.f32 0.0, %v537
        %v539 = vpop.f32.mrf.mxu0
        %v540 = vpop.f32.mrf.mxu0
        %v541 = vpop.f32.mrf.mxu0
        %542 = vdwg.mxu0
        %v543 = vsel %vm378, %v538, -inf
        %544 = vmax.xlane.f32.xlu0 %v543
        %v545 = vpop.xlane.xlu0 %544
        %v546 = vsub.f32 %v538, %v545
        %v547 = vmul.f32 %v546, 1.442695
        %v548 = vpow.pop %v547
        %v549 = vsel %vm378, %v548, 0.0
        %550 = vadd.xlane.f32.xlu0 %v549
        %v551 = vpop.xlane.xlu0 %550
        %v552 = vpack.c.bf16 %v548, %v548
        %v554 = vunpack.c.l.b16 %v488
        %v555 = vpack.c.b16 %v554, %v554
        %556 = vrot.lane.b32.xlu0 %v555, 120
        %v557 = vpop.permute.xlu0 %556
        %v559 = vsel %vm378, %v552, 0
        %v562 = vsel %vm438, %v557, 0
        %564 = vmatprep.subr.bf16.mxu0 0
        %565 = vmatpush1.bf16.msra.mxu0 0
        %566 = vmatprep.subr.bf16.mxu0 0
        %567 = vmatpush1.bf16.msra.mxu0 0
        %568 = vmatprep.subr.bf16.mxu0 0
        %569 = vmatpush1.bf16.msra.mxu0 0
        %570 = vmatprep.subr.bf16.mxu0 0
        %571 = vmatpush1.bf16.msra.mxu0 0
        %572 = vmatprep.subr.bf16.mxu0 0
        %573 = vmatpush1.bf16.msra.mxu0 0
        %574 = vmatprep.subr.bf16.mxu0 0
        %575 = vmatpush1.bf16.msra.mxu0 0
        %576 = vmatprep.subr.bf16.mxu0 0
        %577 = vmatpush1.bf16.msra.mxu0 0
        %578 = vmatprep.subr.bf16.mxu0 0
        %579 = vmatpush1.bf16.msra.mxu0 %v562
        %580 = vmatprep.subr.bf16.mxu0 0
        %581 = vmatpush2.bf16.msra.mxu0 0
        %582 = vmatprep.subr.bf16.mxu0 0
        %583 = vmatpush2.bf16.msra.mxu0 0
        %584 = vmatprep.subr.bf16.mxu0 0
        %585 = vmatpush2.bf16.msra.mxu0 0
        %586 = vmatprep.subr.bf16.mxu0 0
        %587 = vmatpush2.bf16.msra.mxu0 0
        %588 = vmatprep.subr.bf16.mxu0 0
        %589 = vmatpush2.bf16.msra.mxu0 0
        %590 = vmatprep.subr.bf16.mxu0 0
        %591 = vmatpush2.bf16.msra.mxu0 0
        %592 = vmatprep.subr.bf16.mxu0 0
        %593 = vmatpush2.bf16.msra.mxu0 0
        %594 = vmatprep.subr.bf16.mxu0 0
        %595 = vmatpush2.bf16.msra.mxu0 0
        %596 = vmatprep.mubr.bf16.mxu0 0
        %597 = vmatmul.mubr.bf16.gmra.mxu0 %v559
        %v598 = vpop.f32.mrf.mxu0
        %v599 = vadd.f32 0.0, %v598
        %v600 = vpop.f32.mrf.mxu0
        %v601 = vpop.f32.mrf.mxu0
        %v602 = vpop.f32.mrf.mxu0
        %603 = vdwg.mxu0
        %v604 = vrcp.pop %v551
        %v605 = vmul.f32 %v599, %v604
        %v606 = vpack.c.bf16 %v605, %v605
        %v608 = vunpack.c.l.b16 %v606
        %v609 = vpack.c.b16 %v608, %v608
        %610 = vrot.lane.b32.xlu0 %v609, 8
        %v611 = vpop.permute.xlu0 %610
        %vm613 = vcmask 126016
        %614 = vst.msk [vmem:[#allocation5] sm:$0xf] %vm613, %v611
        %v615 = vld [vmem:[#allocation3] sm:$0xf]
        %v616 = vld [vmem:[#allocation4] sm:$0xf]
        %617 = vrot.lane.b32.xlu0 %v375, 112
        %v618 = vpop.permute.xlu0 %617
        %v620 = vunpack.c.l.b16 %v615
        %v621 = vpack.c.b16 %v620, %v620
        %622 = vrot.lane.b32.xlu0 %v621, 112
        %v623 = vpop.permute.xlu0 %622
        %v625 = vsel %vm378, %v618, 0
        %v628 = vsel %vm378, %v623, 0
        %630 = vmatprep.subr.bf16.mxu0 0
        %631 = vmatpush1.bf16.xpose.msra.mxu0 0
        %632 = vmatprep.subr.bf16.mxu0 0
        %633 = vmatpush1.bf16.xpose.msra.mxu0 0
        %634 = vmatprep.subr.bf16.mxu0 0
        %635 = vmatpush1.bf16.xpose.msra.mxu0 0
        %636 = vmatprep.subr.bf16.mxu0 0
        %637 = vmatpush1.bf16.xpose.msra.mxu0 0
        %638 = vmatprep.subr.bf16.mxu0 0
        %639 = vmatpush1.bf16.xpose.msra.mxu0 0
        %640 = vmatprep.subr.bf16.mxu0 0
        %641 = vmatpush1.bf16.xpose.msra.mxu0 0
        %642 = vmatprep.subr.bf16.mxu0 0
        %643 = vmatpush1.bf16.xpose.msra.mxu0 0
        %644 = vmatprep.subr.bf16.mxu0 0
        %645 = vmatpush1.bf16.xpose.msra.mxu0 %v628
        %646 = vmatprep.subr.bf16.mxu0 0
        %647 = vmatpush2.bf16.xpose.msra.mxu0 0
        %648 = vmatprep.subr.bf16.mxu0 0
        %649 = vmatpush2.bf16.xpose.msra.mxu0 0
        %650 = vmatprep.subr.bf16.mxu0 0
        %651 = vmatpush2.bf16.xpose.msra.mxu0 0
        %652 = vmatprep.subr.bf16.mxu0 0
        %653 = vmatpush2.bf16.xpose.msra.mxu0 0
        %654 = vmatprep.subr.bf16.mxu0 0
        %655 = vmatpush2.bf16.xpose.msra.mxu0 0
        %656 = vmatprep.subr.bf16.mxu0 0
        %657 = vmatpush2.bf16.xpose.msra.mxu0 0
        %658 = vmatprep.subr.bf16.mxu0 0
        %659 = vmatpush2.bf16.xpose.msra.mxu0 0
        %660 = vmatprep.subr.bf16.mxu0 0
        %661 = vmatpush2.bf16.xpose.msra.mxu0 0
        %662 = vmatprep.mubr.bf16.mxu0 0
        %663 = vmatmul.mubr.bf16.gmra.mxu0 %v625
        %v664 = vpop.f32.mrf.mxu0
        %v665 = vadd.f32 0.0, %v664
        %v666 = vpop.f32.mrf.mxu0
        %v667 = vpop.f32.mrf.mxu0
        %v668 = vpop.f32.mrf.mxu0
        %669 = vdwg.mxu0
        %v670 = vsel %vm378, %v665, -inf
        %671 = vmax.xlane.f32.xlu0 %v670
        %v672 = vpop.xlane.xlu0 %671
        %v673 = vsub.f32 %v665, %v672
        %v674 = vmul.f32 %v673, 1.442695
        %v675 = vpow.pop %v674
        %v676 = vsel %vm378, %v675, 0.0
        %677 = vadd.xlane.f32.xlu0 %v676
        %v678 = vpop.xlane.xlu0 %677
        %v679 = vpack.c.bf16 %v675, %v675
        %v681 = vunpack.c.l.b16 %v616
        %v682 = vpack.c.b16 %v681, %v681
        %683 = vrot.lane.b32.xlu0 %v682, 112
        %v684 = vpop.permute.xlu0 %683
        %v686 = vsel %vm378, %v679, 0
        %v689 = vsel %vm438, %v684, 0
        %691 = vmatprep.subr.bf16.mxu0 0
        %692 = vmatpush1.bf16.msra.mxu0 0
        %693 = vmatprep.subr.bf16.mxu0 0
        %694 = vmatpush1.bf16.msra.mxu0 0
        %695 = vmatprep.subr.bf16.mxu0 0
        %696 = vmatpush1.bf16.msra.mxu0 0
        %697 = vmatprep.subr.bf16.mxu0 0
        %698 = vmatpush1.bf16.msra.mxu0 0
        %699 = vmatprep.subr.bf16.mxu0 0
        %700 = vmatpush1.bf16.msra.mxu0 0
        %701 = vmatprep.subr.bf16.mxu0 0
        %702 = vmatpush1.bf16.msra.mxu0 0
        %703 = vmatprep.subr.bf16.mxu0 0
        %704 = vmatpush1.bf16.msra.mxu0 0
        %705 = vmatprep.subr.bf16.mxu0 0
        %706 = vmatpush1.bf16.msra.mxu0 %v689
        %707 = vmatprep.subr.bf16.mxu0 0
        %708 = vmatpush2.bf16.msra.mxu0 0
        %709 = vmatprep.subr.bf16.mxu0 0
        %710 = vmatpush2.bf16.msra.mxu0 0
        %711 = vmatprep.subr.bf16.mxu0 0
        %712 = vmatpush2.bf16.msra.mxu0 0
        %713 = vmatprep.subr.bf16.mxu0 0
        %714 = vmatpush2.bf16.msra.mxu0 0
        %715 = vmatprep.subr.bf16.mxu0 0
        %716 = vmatpush2.bf16.msra.mxu0 0
        %717 = vmatprep.subr.bf16.mxu0 0
        %718 = vmatpush2.bf16.msra.mxu0 0
        %719 = vmatprep.subr.bf16.mxu0 0
        %720 = vmatpush2.bf16.msra.mxu0 0
        %721 = vmatprep.subr.bf16.mxu0 0
        %722 = vmatpush2.bf16.msra.mxu0 0
        %723 = vmatprep.mubr.bf16.mxu0 0
        %724 = vmatmul.mubr.bf16.gmra.mxu0 %v686
        %v725 = vpop.f32.mrf.mxu0
        %v726 = vadd.f32 0.0, %v725
        %v727 = vpop.f32.mrf.mxu0
        %v728 = vpop.f32.mrf.mxu0
        %v729 = vpop.f32.mrf.mxu0
        %730 = vdwg.mxu0
        %v731 = vrcp.pop %v678
        %v732 = vmul.f32 %v726, %v731
        %v733 = vpack.c.bf16 %v732, %v732
        %v735 = vunpack.c.l.b16 %v733
        %v736 = vpack.c.b16 %v735, %v735
        %737 = vrot.lane.b32.xlu0 %v736, 16
        %v738 = vpop.permute.xlu0 %737
        %vm740 = vcmask 191616
        %741 = vst.msk [vmem:[#allocation5] sm:$0xf] %vm740, %v738
        %v742 = vld [vmem:[#allocation3] sm:$0xf]
        %v743 = vld [vmem:[#allocation4] sm:$0xf]
        %744 = vrot.lane.b32.xlu0 %v375, 104
        %v745 = vpop.permute.xlu0 %744
        %v747 = vunpack.c.l.b16 %v742
        %v748 = vpack.c.b16 %v747, %v747
        %749 = vrot.lane.b32.xlu0 %v748, 104
        %v750 = vpop.permute.xlu0 %749
        %v752 = vsel %vm378, %v745, 0
        %v755 = vsel %vm378, %v750, 0
        %757 = vmatprep.subr.bf16.mxu0 0
        %758 = vmatpush1.bf16.xpose.msra.mxu0 0
        %759 = vmatprep.subr.bf16.mxu0 0
        %760 = vmatpush1.bf16.xpose.msra.mxu0 0
        %761 = vmatprep.subr.bf16.mxu0 0
        %762 = vmatpush1.bf16.xpose.msra.mxu0 0
        %763 = vmatprep.subr.bf16.mxu0 0
        %764 = vmatpush1.bf16.xpose.msra.mxu0 0
        %765 = vmatprep.subr.bf16.mxu0 0
        %766 = vmatpush1.bf16.xpose.msra.mxu0 0
        %767 = vmatprep.subr.bf16.mxu0 0
        %768 = vmatpush1.bf16.xpose.msra.mxu0 0
        %769 = vmatprep.subr.bf16.mxu0 0
        %770 = vmatpush1.bf16.xpose.msra.mxu0 0
        %771 = vmatprep.subr.bf16.mxu0 0
        %772 = vmatpush1.bf16.xpose.msra.mxu0 %v755
        %773 = vmatprep.subr.bf16.mxu0 0
        %774 = vmatpush2.bf16.xpose.msra.mxu0 0
        %775 = vmatprep.subr.bf16.mxu0 0
        %776 = vmatpush2.bf16.xpose.msra.mxu0 0
        %777 = vmatprep.subr.bf16.mxu0 0
        %778 = vmatpush2.bf16.xpose.msra.mxu0 0
        %779 = vmatprep.subr.bf16.mxu0 0
        %780 = vmatpush2.bf16.xpose.msra.mxu0 0
        %781 = vmatprep.subr.bf16.mxu0 0
        %782 = vmatpush2.bf16.xpose.msra.mxu0 0
        %783 = vmatprep.subr.bf16.mxu0 0
        %784 = vmatpush2.bf16.xpose.msra.mxu0 0
        %785 = vmatprep.subr.bf16.mxu0 0
        %786 = vmatpush2.bf16.xpose.msra.mxu0 0
        %787 = vmatprep.subr.bf16.mxu0 0
        %788 = vmatpush2.bf16.xpose.msra.mxu0 0
        %789 = vmatprep.mubr.bf16.mxu0 0
        %790 = vmatmul.mubr.bf16.gmra.mxu0 %v752
        %v791 = vpop.f32.mrf.mxu0
        %v792 = vadd.f32 0.0, %v791
        %v793 = vpop.f32.mrf.mxu0
        %v794 = vpop.f32.mrf.mxu0
        %v795 = vpop.f32.mrf.mxu0
        %796 = vdwg.mxu0
        %v797 = vsel %vm378, %v792, -inf
        %798 = vmax.xlane.f32.xlu0 %v797
        %v799 = vpop.xlane.xlu0 %798
        %v800 = vsub.f32 %v792, %v799
        %v801 = vmul.f32 %v800, 1.442695
        %v802 = vpow.pop %v801
        %v803 = vsel %vm378, %v802, 0.0
        %804 = vadd.xlane.f32.xlu0 %v803
        %v805 = vpop.xlane.xlu0 %804
        %v806 = vpack.c.bf16 %v802, %v802
        %v808 = vunpack.c.l.b16 %v743
        %v809 = vpack.c.b16 %v808, %v808
        %810 = vrot.lane.b32.xlu0 %v809, 104
        %v811 = vpop.permute.xlu0 %810
        %v813 = vsel %vm378, %v806, 0
        %v816 = vsel %vm438, %v811, 0
        %818 = vmatprep.subr.bf16.mxu0 0
        %819 = vmatpush1.bf16.msra.mxu0 0
        %820 = vmatprep.subr.bf16.mxu0 0
        %821 = vmatpush1.bf16.msra.mxu0 0
        %822 = vmatprep.subr.bf16.mxu0 0
        %823 = vmatpush1.bf16.msra.mxu0 0
        %824 = vmatprep.subr.bf16.mxu0 0
        %825 = vmatpush1.bf16.msra.mxu0 0
        %826 = vmatprep.subr.bf16.mxu0 0
        %827 = vmatpush1.bf16.msra.mxu0 0
        %828 = vmatprep.subr.bf16.mxu0 0
        %829 = vmatpush1.bf16.msra.mxu0 0
        %830 = vmatprep.subr.bf16.mxu0 0
        %831 = vmatpush1.bf16.msra.mxu0 0
        %832 = vmatprep.subr.bf16.mxu0 0
        %833 = vmatpush1.bf16.msra.mxu0 %v816
        %834 = vmatprep.subr.bf16.mxu0 0
        %835 = vmatpush2.bf16.msra.mxu0 0
        %836 = vmatprep.subr.bf16.mxu0 0
        %837 = vmatpush2.bf16.msra.mxu0 0
        %838 = vmatprep.subr.bf16.mxu0 0
        %839 = vmatpush2.bf16.msra.mxu0 0
        %840 = vmatprep.subr.bf16.mxu0 0
        %841 = vmatpush2.bf16.msra.mxu0 0
        %842 = vmatprep.subr.bf16.mxu0 0
        %843 = vmatpush2.bf16.msra.mxu0 0
        %844 = vmatprep.subr.bf16.mxu0 0
        %845 = vmatpush2.bf16.msra.mxu0 0
        %846 = vmatprep.subr.bf16.mxu0 0
        %847 = vmatpush2.bf16.msra.mxu0 0
        %848 = vmatprep.subr.bf16.mxu0 0
        %849 = vmatpush2.bf16.msra.mxu0 0
        %850 = vmatprep.mubr.bf16.mxu0 0
        %851 = vmatmul.mubr.bf16.gmra.mxu0 %v813
        %v852 = vpop.f32.mrf.mxu0
        %v853 = vadd.f32 0.0, %v852
        %v854 = vpop.f32.mrf.mxu0
        %v855 = vpop.f32.mrf.mxu0
        %v856 = vpop.f32.mrf.mxu0
        %857 = vdwg.mxu0
        %v858 = vrcp.pop %v805
        %v859 = vmul.f32 %v853, %v858
        %v860 = vpack.c.bf16 %v859, %v859
        %v862 = vunpack.c.l.b16 %v860
        %v863 = vpack.c.b16 %v862, %v862
        %864 = vrot.lane.b32.xlu0 %v863, 24
        %v865 = vpop.permute.xlu0 %864
        %vm867 = vcmask 257216
        %868 = vst.msk [vmem:[#allocation5] sm:$0xf] %vm867, %v865
        %v869 = vld [vmem:[#allocation5] sm:$0xf]
        %v870 = vld [vmem:[#allocation11] sm:$0xf]
        %v871 = vld [vmem:[#allocation11 + $0x4] sm:$0xf]
        %v872 = vld [vmem:[#allocation11 + $0x8] sm:$0xf]
        %v873 = vld [vmem:[#allocation11 + $0xc] sm:$0xf]
        %v874 = vld [vmem:[%s4] sm:$0x1]
        %v876 = vlaneseq
        %v877 = vshrl.u32 %v876, 7
        %v878 = vsub.s32 0, %v877
        %v879 = vrot.slane %v874, %v878
        %v885 = vunpack.c.l.b16 %v870
        %v886 = vunpack.c.l.b16 %v871
        %v887 = vunpack.c.l.b16 %v872
        %v888 = vunpack.c.l.b16 %v873
        %v889 = vpack.c.b16 %v886, %v885
        %v890 = vpack.c.b16 %v888, %v887
        %vm893 = vcmask 261120
        %v895 = vsel %vm893, %v869, 0
        %897 = vmatprep.subr.bf16.mxu0 0
        %898 = vmatpush1.bf16.msra.mxu0 0
        %899 = vmatprep.subr.bf16.mxu0 0
        %900 = vmatpush1.bf16.msra.mxu0 0
        %901 = vmatprep.subr.bf16.mxu0 0
        %902 = vmatpush1.bf16.msra.mxu0 0
        %903 = vmatprep.subr.bf16.mxu0 0
        %904 = vmatpush1.bf16.msra.mxu0 0
        %905 = vmatprep.subr.bf16.mxu0 0
        %906 = vmatpush1.bf16.msra.mxu0 0
        %907 = vmatprep.subr.bf16.mxu0 0
        %908 = vmatpush1.bf16.msra.mxu0 0
        %909 = vmatprep.subr.bf16.mxu0 0
        %910 = vmatpush1.bf16.msra.mxu0 %v890
        %911 = vmatprep.subr.bf16.mxu0 0
        %912 = vmatpush1.bf16.msra.mxu0 %v889
        %913 = vmatprep.subr.bf16.mxu0 0
        %914 = vmatpush2.bf16.msra.mxu0 0
        %915 = vmatprep.subr.bf16.mxu0 0
        %916 = vmatpush2.bf16.msra.mxu0 0
        %917 = vmatprep.subr.bf16.mxu0 0
        %918 = vmatpush2.bf16.msra.mxu0 0
        %919 = vmatprep.subr.bf16.mxu0 0
        %920 = vmatpush2.bf16.msra.mxu0 0
        %921 = vmatprep.subr.bf16.mxu0 0
        %922 = vmatpush2.bf16.msra.mxu0 0
        %923 = vmatprep.subr.bf16.mxu0 0
        %924 = vmatpush2.bf16.msra.mxu0 0
        %925 = vmatprep.subr.bf16.mxu0 0
        %926 = vmatpush2.bf16.msra.mxu0 0
        %927 = vmatprep.subr.bf16.mxu0 0
        %928 = vmatpush2.bf16.msra.mxu0 0
        %929 = vmatprep.mubr.bf16.mxu0 0
        %930 = vmatmul.mubr.bf16.gmra.mxu0 %v895
        %v931 = vpop.f32.mrf.mxu0
        %v932 = vadd.f32 %v879, %v931
        %v933 = vpop.f32.mrf.mxu0
        %v934 = vpop.f32.mrf.mxu0
        %v935 = vpop.f32.mrf.mxu0
        %936 = vdwg.mxu0
        %937 = vst.msk [vmem:[%s282] sm:$0xff] %vm893, %v932
        %s938 = sand.u32 %s155, 1
        %s939 = scalar_lea.sflag [#allocation8], %s938
        %s940 = sand.u32 %s155, 1
        %s941 = smul.addr %s940, 8
        %s942 = scalar_lea.vmem [#allocation12], %s941
        // Predicated region
        $region57: #{tpu_custom_call.1} parent=39 // pred_check
          %p943 = pneg %p165
        $region58: #{tpu_custom_call.1} parent=39 // pred_check_branch
          %945 = sbr.rel (%p943) target = $region60
        $region59: #{tpu_custom_call.1} parent=39 // pred_region
          %s947 = ssub.s32 128, 128
          %948 = vsyncadd %s939, %s947
          %s949 = sadd.s32 %s28, %s27
          %s950 = smul.addr %s949, 128
          %s951 = scalar_lea.hbm %s5, %s950
          %s953 = sshll.u32 %s942, 4
          %s954 = int_to_ptr.vmem [resolvable:$true] %s953
          %956 = dma.vmem_to_hbm [thread:$0]  %s954, 128, %s951, %s939
        $region60: #{tpu_custom_call.1} parent=39 // pred_fallthru
          _
      $region40: #{tpu_custom_call.1} parent=5 // pred_fallthru
        _
      %p957 = scmp.le.s32.totalorder 2, %s18
      // Predicated region
      $region61: #{tpu_custom_call.1} parent=5 // pred_check
        %p958 = pneg %p957
      $region62: #{tpu_custom_call.1} parent=5 // pred_check_branch
        %960 = sbr.rel (%p958) target = $region64
      $region63: #{tpu_custom_call.1} parent=5 // pred_region
        %s961 = ssub.s32 %s18, 2
        // Predicated region
        $region65: #{tpu_custom_call.1} parent=63 // pred_check
          %p962 = pneg %p171
        $region66: #{tpu_custom_call.1} parent=63 // pred_check_branch
          %964 = sbr.rel (%p962) target = $region68
        $region67: #{tpu_custom_call.1} parent=63 // pred_region
          %s965 = sand.u32 %s156, 1
          %s966 = scalar_lea.sflag [#allocation8], %s965
          %s967 = sand.u32 %s156, 1
          %s968 = smul.addr %s967, 8
          %s969 = scalar_lea.vmem [#allocation12], %s968
          %970 = dma.done %s966, 128
        $region68: #{tpu_custom_call.1} parent=63 // pred_fallthru
          _
      $region64: #{tpu_custom_call.1} parent=5 // pred_fallthru
        _
    $region6: #{tpu_custom_call.1} parent=1 // loop_footer
      %s22 = sadd.s32 1, %s18
    $region7: #{tpu_custom_call.1} parent=1 // loop_footer_branch
      %17 = sbr.rel target = $region3
    $region8: #{tpu_custom_call.1} parent=1 // loop_exit
      _
    %971 = vsyncpa [#allocation7], 1
    %s972 = scalar_lea.sflag [#allocation7], 1
    %973 = vsyncpa %s972, 1
    %974 = vsyncpa [#allocation10], 1
    %975 = vsyncpa [#allocation8], 1
    %s976 = scalar_lea.sflag [#allocation8], 1
    %977 = vsyncpa %s976, 1

</llo_original>
